<compile_context>
chip_gen: v5e
topology: v5e:2x2
jax: 0.10.0
libtpu: 0.0.40
codegen_flags: <defaults>
</compile_context>

<pallas_src>
import functools

import jax
import jax.numpy as jnp
import numpy as np
from jax.experimental import pallas as pl
from jax.experimental.pallas import tpu as pltpu


LN_EPS = 1e-5  # PyTorch nn.LayerNorm default


def _round_up(x, m):
    return ((x + m - 1) // m) * m


def _masked_layernorm(h, gamma, beta, mask, true_f):
    """LayerNorm over the first `true_f` lanes of h.

    h: (TB, Fp) f32 with padded lanes (>= true_f) exactly zero.
    gamma/beta: (1, Fp) f32, zero in padded lanes -> padded output lanes stay 0.
    mask: (1, Fp) f32 precomputed {1,0} validity mask (replaces per-step iota).
    """
    inv_n = 1.0 / float(true_f)
    mean = jnp.sum(h, axis=-1, keepdims=True) * inv_n    # padded lanes are 0
    centered = h - mean
    if h.shape[-1] != true_f:
        centered_v = centered * mask    # kill the (-mean) leak in padded lanes
    else:
        centered_v = centered
    var = jnp.sum(centered_v * centered_v, axis=-1, keepdims=True) * inv_n
    inv = jax.lax.rsqrt(var + LN_EPS)
    return centered * inv * gamma + beta


def actor_kernel(x_ref, w1_ref, w2_ref, w3_ref, vec_ref, out_ref,
                 *, f1, f2, f1p, f2p, ap):
    # x_ref: (TB, D) f32 (feature dim unpadded); w*_ref: zero-padded bf16
    # weights; vec_ref: (16, Fmax) f32 slab of biases / LN params / masks.
    x = x_ref[...].astype(jnp.bfloat16)      # in-kernel cast: no wrapper copy
    b1, g1, be1, m1 = (vec_ref[0:1, :f1p], vec_ref[1:2, :f1p],
                       vec_ref[2:3, :f1p], vec_ref[3:4, :f1p])
    b2, g2, be2, m2 = (vec_ref[4:5, :f2p], vec_ref[5:6, :f2p],
                       vec_ref[6:7, :f2p], vec_ref[7:8, :f2p])
    b3 = vec_ref[8:9, :ap]

    # fc1 -> LayerNorm -> relu  (bf16 MXU operands, f32 accumulate + epilogue)
    h = jnp.dot(x, w1_ref[...], preferred_element_type=jnp.float32) + b1
    h = jnp.maximum(_masked_layernorm(h, g1, be1, m1, f1), 0.0)

    # fc2 -> LayerNorm -> relu
    h = jnp.dot(h.astype(jnp.bfloat16), w2_ref[...],
                preferred_element_type=jnp.float32) + b2
    h = jnp.maximum(_masked_layernorm(h, g2, be2, m2, f2), 0.0)

    # mu -> tanh  (padded action lanes: w3/b3 are zero there -> tanh(0)=0)
    h = jnp.dot(h.astype(jnp.bfloat16), w3_ref[...],
                preferred_element_type=jnp.float32) + b3
    out_ref[...] = jnp.tanh(h).astype(out_ref.dtype)   # bf16 lane-dense store


def prepare_actor_params(params):
    """One-time preparation (hoisted out of the forward path).

    Zero-pads weights to lane-dense bf16 and packs the seven small vectors
    plus two LayerNorm validity masks into a single (16, Fmax) f32 slab.
    Returns (prepared_arrays, static_dims).
    """
    (w1, b1, g1, be1, w2, b2, g2, be2, w3, b3) = params
    d_in, f1 = w1.shape
    f2 = w2.shape[1]
    na = w3.shape[1]
    f1p = _round_up(f1, 128)
    f2p = _round_up(f2, 128)
    ap = _round_up(na, 128)
    fmax = max(f1p, f2p, ap)

    w1p = jnp.zeros((d_in, f1p), jnp.bfloat16).at[:, :f1].set(
        w1.astype(jnp.bfloat16))
    w2p = jnp.zeros((f1p, f2p), jnp.bfloat16).at[:f1, :f2].set(
        w2.astype(jnp.bfloat16))
    w3p = jnp.zeros((f2p, ap), jnp.bfloat16).at[:f2, :na].set(
        w3.astype(jnp.bfloat16))

    def pad_vec(v, width):
        v = v.reshape(-1).astype(jnp.float32)
        return jnp.pad(v, (0, width - v.shape[0]))

    mask1 = pad_vec(jnp.ones((f1,), jnp.float32), fmax)
    mask2 = pad_vec(jnp.ones((f2,), jnp.float32), fmax)
    zero = jnp.zeros((fmax,), jnp.float32)
    slab = jnp.stack([
        pad_vec(b1, fmax), pad_vec(g1, fmax), pad_vec(be1, fmax), mask1,
        pad_vec(b2, fmax), pad_vec(g2, fmax), pad_vec(be2, fmax), mask2,
        pad_vec(b3, fmax), zero, zero, zero, zero, zero, zero, zero,
    ])

    prepared = (w1p, w2p, w3p, slab)
    dims = (int(d_in), int(f1), int(f2), int(na))
    return jax.device_put(prepared), dims


@functools.partial(jax.jit, static_argnames=("dims",))
def actor_forward(state, prepared, dims):
    w1p, w2p, w3p, slab = prepared
    d_in, f1, f2, na = dims
    B = state.shape[0]
    f1p, f2p, ap = w1p.shape[1], w2p.shape[1], w3p.shape[1]
    fmax = slab.shape[1]

    # Adaptive batch tiling:
    #  * large B: cap per-tile rows (<=1024) and guarantee >=2 grid steps so
    #    the "parallel" axis shards across v7x's two TensorCores;
    #  * tile size chosen so batch-padding waste stays under one sublane group;
    #  * tiny B: single tile equal to the full (unpadded) batch.
    cap = 1024
    if B > 8:
        n_tiles = max(2, pl.cdiv(B, cap))
        tb = _round_up(pl.cdiv(B, n_tiles), 8)
    else:
        tb = B
    bp = _round_up(B, tb)
    nb = bp // tb

    # Batch-only padding when needed (feature dim stays unpadded, dtype stays
    # f32; bf16 cast happens inside the kernel -> no padded HBM copy of the
    # activation stream in the common evenly-tiled case).
    xs = state if bp == B else jnp.pad(state, ((0, bp - B), (0, 0)))

    kernel = functools.partial(actor_kernel, f1=f1, f2=f2,
                               f1p=f1p, f2p=f2p, ap=ap)

    out_padded = pl.pallas_call(
        kernel,
        out_shape=jax.ShapeDtypeStruct((bp, ap), jnp.bfloat16),
        grid=(nb,),
        in_specs=[
            # Batch-streamed input (pipelined / double-buffered by Pallas).
            pl.BlockSpec((tb, d_in), lambda i: (i, 0)),
            # Parameters: constant index_map -> resident, no re-DMA per step.
            pl.BlockSpec((d_in, f1p), lambda i: (0, 0)),
            pl.BlockSpec((f1p, f2p), lambda i: (0, 0)),
            pl.BlockSpec((f2p, ap), lambda i: (0, 0)),
            pl.BlockSpec((16, fmax), lambda i: (0, 0)),
        ],
        out_specs=pl.BlockSpec((tb, ap), lambda i: (i, 0)),
        compiler_params=pltpu.CompilerParams(
            dimension_semantics=("parallel",),
        ),
    )(xs, w1p, w2p, w3p, slab)

    # Slice off padding; cast the tiny (B, n_actions) result back to f32.
    return out_padded[:B, :na].astype(jnp.float32)


def init_actor_params(key, input_dims, fc1_dims, fc2_dims, n_actions):
    """Deterministic parameter init mirroring the module's __init__.

    fc1: uniform(-f1, f1) with f1 = 1/sqrt(in)
    fc2: uniform(-0.003, 0.003)  (the module's final init overwrites f2 init)
    mu : PyTorch default uniform(-1/sqrt(in), 1/sqrt(in))
    LayerNorm: gamma=1, beta=0.
    Weights stored (in_features, out_features) so Linear is x @ W + b.
    """
    k1, k2, k3, k4, k5, k6 = jax.random.split(key, 6)

    f1 = 1.0 / np.sqrt(input_dims)
    w1 = jax.random.uniform(k1, (input_dims, fc1_dims), jnp.float32, -f1, f1)
    b1 = jax.random.uniform(k2, (1, fc1_dims), jnp.float32, -f1, f1)
    g1 = jnp.ones((1, fc1_dims), jnp.float32)
    be1 = jnp.zeros((1, fc1_dims), jnp.float32)

    f3 = 0.003
    w2 = jax.random.uniform(k3, (fc1_dims, fc2_dims), jnp.float32, -f3, f3)
    b2 = jax.random.uniform(k4, (1, fc2_dims), jnp.float32, -f3, f3)
    g2 = jnp.ones((1, fc2_dims), jnp.float32)
    be2 = jnp.zeros((1, fc2_dims), jnp.float32)

    fmu = 1.0 / np.sqrt(fc2_dims)
    w3 = jax.random.uniform(k5, (fc2_dims, n_actions), jnp.float32, -fmu, fmu)
    b3 = jax.random.uniform(k6, (1, n_actions), jnp.float32, -fmu, fmu)

    return (w1, b1, g1, be1, w2, b2, g2, be2, w3, b3)


def actor_forward_ref(state, params, bf16_matmul=True):
    """Pure-JAX reference. bf16_matmul=True mirrors the kernel's MXU precision;
    bf16_matmul=False is the exact f32 PyTorch-module semantics."""
    (w1, b1, g1, be1, w2, b2, g2, be2, w3, b3) = params

    if bf16_matmul:
        dot = lambda a, w: jnp.dot(a.astype(jnp.bfloat16), w.astype(jnp.bfloat16),
                                   preferred_element_type=jnp.float32)
    else:
        dot = lambda a, w: jnp.dot(a, w, preferred_element_type=jnp.float32)

    def ln(h, g, b):
        m = jnp.mean(h, axis=-1, keepdims=True)
        v = jnp.mean((h - m) ** 2, axis=-1, keepdims=True)
        return (h - m) / jnp.sqrt(v + LN_EPS) * g + b

    h = jnp.maximum(ln(dot(state, w1) + b1, g1, be1), 0.0)
    h = jnp.maximum(ln(dot(h, w2) + b2, g2, be2), 0.0)
    return jnp.tanh(dot(h, w3) + b3)


if __name__ == "__main__":
    # Small shapes consistent with the module: state is (batch, input_dims).
    batch = 2
    input_dims = 8
    fc1_dims = 32
    fc2_dims = 32
    n_actions = 4

    key = jax.random.PRNGKey(0)
    k_state, k_params = jax.random.split(key)

    state = jax.random.normal(k_state, (batch, input_dims), jnp.float32)
    params = init_actor_params(k_params, input_dims, fc1_dims, fc2_dims,
                               n_actions)

    # One-time parameter preparation, hoisted out of the forward path.
    prepared, dims = prepare_actor_params(params)

    out = jax.block_until_ready(actor_forward(state, prepared, dims))

    # Check against a reference with the same bf16-operand MXU precision
    # (kernel additionally quantizes its output to bf16 -> ~4e-3 abs slack).
    ref_bf16 = actor_forward_ref(state, params, bf16_matmul=True)
    np.testing.assert_allclose(np.asarray(out), np.asarray(ref_bf16),
                               atol=1e-2, rtol=1e-2)

    # Looser check against the exact f32 PyTorch-module semantics.
    ref_f32 = actor_forward_ref(state, params, bf16_matmul=False)
    np.testing.assert_allclose(np.asarray(out), np.asarray(ref_f32),
                               atol=3e-2, rtol=3e-2)

    print("KERNEL_OK")
</pallas_src>

<mosaic_0001>
module attributes {stable_mosaic.version = 11 : i64} {
  func.func @actor_kernel(%arg0: i32, %arg1: memref<2x8xf32, #tpu.memory_space<vmem>>, %arg2: memref<8x128xbf16, #tpu.memory_space<vmem>>, %arg3: memref<128x128xbf16, #tpu.memory_space<vmem>>, %arg4: memref<128x128xbf16, #tpu.memory_space<vmem>>, %arg5: memref<16x128xf32, #tpu.memory_space<vmem>>, %arg6: memref<2x128xbf16, #tpu.memory_space<vmem>>) attributes {dimension_semantics = [#tpu.dimension_semantics<parallel>], iteration_bounds = array<i64: 1>, scalar_prefetch = 0 : i64, scratch_operands = 0 : i64, tpu.core_type = #tpu.core_type<tc>, window_params = [{transform_indices = @transform_0, window_bounds = array<i64: 2, 8>}, {pipeline_mode = #tpu.pipeline_mode<synchronous>, transform_indices = @transform_1, window_bounds = array<i64: 8, 128>}, {pipeline_mode = #tpu.pipeline_mode<synchronous>, transform_indices = @transform_2, window_bounds = array<i64: 128, 128>}, {pipeline_mode = #tpu.pipeline_mode<synchronous>, transform_indices = @transform_3, window_bounds = array<i64: 128, 128>}, {pipeline_mode = #tpu.pipeline_mode<synchronous>, transform_indices = @transform_4, window_bounds = array<i64: 16, 128>}, {transform_indices = @transform_5, window_bounds = array<i64: 2, 128>}]} {
    %c0 = arith.constant 0 : index
    %c0_0 = arith.constant 0 : index
    %0 = vector.load %arg1[%c0, %c0_0] : memref<2x8xf32, #tpu.memory_space<vmem>>, vector<2x8xf32>
    %1 = arith.truncf %0 : vector<2x8xf32> to vector<2x8xbf16>
    %c0_1 = arith.constant 0 : index
    %c0_2 = arith.constant 0 : index
    %2 = vector.load %arg5[%c0_1, %c0_2] : memref<16x128xf32, #tpu.memory_space<vmem>>, vector<1x128xf32>
    %c1 = arith.constant 1 : index
    %c0_3 = arith.constant 0 : index
    %3 = vector.load %arg5[%c1, %c0_3] : memref<16x128xf32, #tpu.memory_space<vmem>>, vector<1x128xf32>
    %c2 = arith.constant 2 : index
    %c0_4 = arith.constant 0 : index
    %4 = vector.load %arg5[%c2, %c0_4] : memref<16x128xf32, #tpu.memory_space<vmem>>, vector<1x128xf32>
    %c3 = arith.constant 3 : index
    %c0_5 = arith.constant 0 : index
    %5 = vector.load %arg5[%c3, %c0_5] : memref<16x128xf32, #tpu.memory_space<vmem>>, vector<1x128xf32>
    %c4 = arith.constant 4 : index
    %c0_6 = arith.constant 0 : index
    %6 = vector.load %arg5[%c4, %c0_6] : memref<16x128xf32, #tpu.memory_space<vmem>>, vector<1x128xf32>
    %c5 = arith.constant 5 : index
    %c0_7 = arith.constant 0 : index
    %7 = vector.load %arg5[%c5, %c0_7] : memref<16x128xf32, #tpu.memory_space<vmem>>, vector<1x128xf32>
    %c6 = arith.constant 6 : index
    %c0_8 = arith.constant 0 : index
    %8 = vector.load %arg5[%c6, %c0_8] : memref<16x128xf32, #tpu.memory_space<vmem>>, vector<1x128xf32>
    %c7 = arith.constant 7 : index
    %c0_9 = arith.constant 0 : index
    %9 = vector.load %arg5[%c7, %c0_9] : memref<16x128xf32, #tpu.memory_space<vmem>>, vector<1x128xf32>
    %c8 = arith.constant 8 : index
    %c0_10 = arith.constant 0 : index
    %10 = vector.load %arg5[%c8, %c0_10] : memref<16x128xf32, #tpu.memory_space<vmem>>, vector<1x128xf32>
    %c0_11 = arith.constant 0 : index
    %c0_12 = arith.constant 0 : index
    %11 = vector.load %arg2[%c0_11, %c0_12] : memref<8x128xbf16, #tpu.memory_space<vmem>>, vector<8x128xbf16>
    %cst = arith.constant dense<0.000000e+00> : vector<2x128xf32>
    %12 = tpu.matmul %1, %11, %cst {dimension_numbers = #tpu.dot_dimension_numbers<[1], [0], [0], [1], [0, 0, 1, 1], [], []>} : vector<2x8xbf16>, vector<8x128xbf16>, vector<2x128xf32> -> vector<2x128xf32>
    %13 = vector.broadcast %2 : vector<1x128xf32> to vector<2x128xf32>
    %14 = arith.addf %12, %13 : vector<2x128xf32>
    %cst_13 = arith.constant dense<0.000000e+00> : vector<2xf32>
    %15 = vector.multi_reduction <add>, %14, %cst_13 [1] : vector<2x128xf32> to vector<2xf32>
    %16 = vector.shape_cast %15 : vector<2xf32> to vector<2x1xf32>
    %cst_14 = arith.constant 3.125000e-02 : f32
    %17 = vector.broadcast %cst_14 : f32 to vector<2x1xf32>
    %18 = arith.mulf %16, %17 : vector<2x1xf32>
    %19 = vector.broadcast %18 : vector<2x1xf32> to vector<2x128xf32>
    %20 = arith.subf %14, %19 : vector<2x128xf32>
    %21 = vector.broadcast %5 : vector<1x128xf32> to vector<2x128xf32>
    %22 = arith.mulf %20, %21 : vector<2x128xf32>
    %23 = arith.mulf %22, %22 : vector<2x128xf32>
    %cst_15 = arith.constant dense<0.000000e+00> : vector<2xf32>
    %24 = vector.multi_reduction <add>, %23, %cst_15 [1] : vector<2x128xf32> to vector<2xf32>
    %25 = vector.shape_cast %24 : vector<2xf32> to vector<2x1xf32>
    %cst_16 = arith.constant 3.125000e-02 : f32
    %26 = vector.broadcast %cst_16 : f32 to vector<2x1xf32>
    %27 = arith.mulf %25, %26 : vector<2x1xf32>
    %cst_17 = arith.constant 9.99999974E-6 : f32
    %28 = vector.broadcast %cst_17 : f32 to vector<2x1xf32>
    %29 = arith.addf %27, %28 : vector<2x1xf32>
    %30 = math.rsqrt %29 : vector<2x1xf32>
    %31 = vector.broadcast %30 : vector<2x1xf32> to vector<2x128xf32>
    %32 = arith.mulf %20, %31 : vector<2x128xf32>
    %33 = vector.broadcast %3 : vector<1x128xf32> to vector<2x128xf32>
    %34 = arith.mulf %32, %33 : vector<2x128xf32>
    %35 = vector.broadcast %4 : vector<1x128xf32> to vector<2x128xf32>
    %36 = arith.addf %34, %35 : vector<2x128xf32>
    %cst_18 = arith.constant 0.000000e+00 : f32
    %37 = vector.broadcast %cst_18 : f32 to vector<2x128xf32>
    %38 = arith.maximumf %36, %37 : vector<2x128xf32>
    %39 = arith.truncf %38 : vector<2x128xf32> to vector<2x128xbf16>
    %c0_19 = arith.constant 0 : index
    %c0_20 = arith.constant 0 : index
    %40 = vector.load %arg3[%c0_19, %c0_20] : memref<128x128xbf16, #tpu.memory_space<vmem>>, vector<128x128xbf16>
    %cst_21 = arith.constant dense<0.000000e+00> : vector<2x128xf32>
    %41 = tpu.matmul %39, %40, %cst_21 {dimension_numbers = #tpu.dot_dimension_numbers<[1], [0], [0], [1], [0, 0, 1, 1], [], []>} : vector<2x128xbf16>, vector<128x128xbf16>, vector<2x128xf32> -> vector<2x128xf32>
    %42 = vector.broadcast %6 : vector<1x128xf32> to vector<2x128xf32>
    %43 = arith.addf %41, %42 : vector<2x128xf32>
    %cst_22 = arith.constant dense<0.000000e+00> : vector<2xf32>
    %44 = vector.multi_reduction <add>, %43, %cst_22 [1] : vector<2x128xf32> to vector<2xf32>
    %45 = vector.shape_cast %44 : vector<2xf32> to vector<2x1xf32>
    %cst_23 = arith.constant 3.125000e-02 : f32
    %46 = vector.broadcast %cst_23 : f32 to vector<2x1xf32>
    %47 = arith.mulf %45, %46 : vector<2x1xf32>
    %48 = vector.broadcast %47 : vector<2x1xf32> to vector<2x128xf32>
    %49 = arith.subf %43, %48 : vector<2x128xf32>
    %50 = vector.broadcast %9 : vector<1x128xf32> to vector<2x128xf32>
    %51 = arith.mulf %49, %50 : vector<2x128xf32>
    %52 = arith.mulf %51, %51 : vector<2x128xf32>
    %cst_24 = arith.constant dense<0.000000e+00> : vector<2xf32>
    %53 = vector.multi_reduction <add>, %52, %cst_24 [1] : vector<2x128xf32> to vector<2xf32>
    %54 = vector.shape_cast %53 : vector<2xf32> to vector<2x1xf32>
    %cst_25 = arith.constant 3.125000e-02 : f32
    %55 = vector.broadcast %cst_25 : f32 to vector<2x1xf32>
    %56 = arith.mulf %54, %55 : vector<2x1xf32>
    %cst_26 = arith.constant 9.99999974E-6 : f32
    %57 = vector.broadcast %cst_26 : f32 to vector<2x1xf32>
    %58 = arith.addf %56, %57 : vector<2x1xf32>
    %59 = math.rsqrt %58 : vector<2x1xf32>
    %60 = vector.broadcast %59 : vector<2x1xf32> to vector<2x128xf32>
    %61 = arith.mulf %49, %60 : vector<2x128xf32>
    %62 = vector.broadcast %7 : vector<1x128xf32> to vector<2x128xf32>
    %63 = arith.mulf %61, %62 : vector<2x128xf32>
    %64 = vector.broadcast %8 : vector<1x128xf32> to vector<2x128xf32>
    %65 = arith.addf %63, %64 : vector<2x128xf32>
    %cst_27 = arith.constant 0.000000e+00 : f32
    %66 = vector.broadcast %cst_27 : f32 to vector<2x128xf32>
    %67 = arith.maximumf %65, %66 : vector<2x128xf32>
    %68 = arith.truncf %67 : vector<2x128xf32> to vector<2x128xbf16>
    %c0_28 = arith.constant 0 : index
    %c0_29 = arith.constant 0 : index
    %69 = vector.load %arg4[%c0_28, %c0_29] : memref<128x128xbf16, #tpu.memory_space<vmem>>, vector<128x128xbf16>
    %cst_30 = arith.constant dense<0.000000e+00> : vector<2x128xf32>
    %70 = tpu.matmul %68, %69, %cst_30 {dimension_numbers = #tpu.dot_dimension_numbers<[1], [0], [0], [1], [0, 0, 1, 1], [], []>} : vector<2x128xbf16>, vector<128x128xbf16>, vector<2x128xf32> -> vector<2x128xf32>
    %71 = vector.broadcast %10 : vector<1x128xf32> to vector<2x128xf32>
    %72 = arith.addf %70, %71 : vector<2x128xf32>
    %73 = math.tanh %72 : vector<2x128xf32>
    %74 = arith.truncf %73 : vector<2x128xf32> to vector<2x128xbf16>
    %c0_31 = arith.constant 0 : index
    %c0_32 = arith.constant 0 : index
    %75 = vector.load %arg6[%c0_31, %c0_32] : memref<2x128xbf16, #tpu.memory_space<vmem>>, vector<2x128xbf16>
    tpu.vector_store %arg6[%c0_31, %c0_32], %74 {strides = array<i32>} : memref<2x128xbf16, #tpu.memory_space<vmem>>, vector<2x128xbf16>,
    return
  }
  func.func @transform_0(%arg0: i32) -> (i32, i32) {
    %c0_i32 = arith.constant 0 : i32
    %c0_i32_0 = arith.constant 0 : i32
    return %arg0, %c0_i32 : i32, i32
  }
  func.func @transform_1(%arg0: i32) -> (i32, i32) {
    %c0_i32 = arith.constant 0 : i32
    %c0_i32_0 = arith.constant 0 : i32
    %c0_i32_1 = arith.constant 0 : i32
    return %c0_i32, %c0_i32_0 : i32, i32
  }
  func.func @transform_2(%arg0: i32) -> (i32, i32) {
    %c0_i32 = arith.constant 0 : i32
    %c0_i32_0 = arith.constant 0 : i32
    %c0_i32_1 = arith.constant 0 : i32
    return %c0_i32, %c0_i32_0 : i32, i32
  }
  func.func @transform_3(%arg0: i32) -> (i32, i32) {
    %c0_i32 = arith.constant 0 : i32
    %c0_i32_0 = arith.constant 0 : i32
    %c0_i32_1 = arith.constant 0 : i32
    return %c0_i32, %c0_i32_0 : i32, i32
  }
  func.func @transform_4(%arg0: i32) -> (i32, i32) {
    %c0_i32 = arith.constant 0 : i32
    %c0_i32_0 = arith.constant 0 : i32
    %c0_i32_1 = arith.constant 0 : i32
    return %c0_i32, %c0_i32_0 : i32, i32
  }
  func.func @transform_5(%arg0: i32) -> (i32, i32) {
    %c0_i32 = arith.constant 0 : i32
    %c0_i32_0 = arith.constant 0 : i32
    return %arg0, %c0_i32 : i32, i32
  }
}

</mosaic_0001>

<llo_original>
// kernel: actor_forward.1
$region0: #{actor_forward.1}
  #allocation0 [shape = 'u32[]', space=smem, size = 0x4, offset = 0x4, fixed_abs, tag = 'smem constant byte address 0x4 - core index']
  #allocation1 [shape = 'u32[72,128]{1,0:T(1,128)}', space=vmem, size = 0x9000, scoped, tag = 'internal scratch']
  %s0 = inlined_call_operand.hbm [shape: f32[2,8], index: 0, kind: input, shape index: {}]
  %s1 = inlined_call_operand.hbm [shape: bf16[8,128], index: 1, kind: input, shape index: {}]
  %s2 = inlined_call_operand.hbm [shape: bf16[128,128], index: 2, kind: input, shape index: {}]
  %s3 = inlined_call_operand.hbm [shape: bf16[128,128], index: 3, kind: input, shape index: {}]
  %s4 = inlined_call_operand.hbm [shape: f32[16,128], index: 4, kind: input, shape index: {}]
  %s5 = inlined_call_operand.vmem [shape: bf16[2,128], index: 5, kind: output, shape index: {}]
  %s6 = sld [smem:[#allocation0]]
  $region50: #{actor_forward.1} parent=0
    _
  %s8 = ssub.s32 1, %s6
  %s9 = scalar_select 0, %s8, %s6
  $region1: #{actor_forward.1} parent=0
    #allocation2 [shape = 'u8[1024]{0}', space=vmem, size = 0x400, scoped, tag = 'input window, operand 0, single buffered']
    #allocation3 [shape = 's32[1]{0}', space=sflag, size = 0x4, scoped, tag = 'scoped memory for actor_forward.1']
    #allocation4 [shape = 'u8[2048]{0}', space=vmem, size = 0x800, scoped, tag = 'input window, operand 1, single buffered']
    #allocation5 [shape = 's32[1]{0}', space=sflag, size = 0x4, scoped, tag = 'scoped memory for actor_forward.1']
    #allocation6 [shape = 'u8[32768]{0}', space=vmem, size = 0x8000, scoped, tag = 'input window, operand 2, single buffered']
    #allocation7 [shape = 'u8[32768]{0}', space=vmem, size = 0x8000, scoped, tag = 'input window, operand 3, single buffered']
    #allocation8 [shape = 's32[1]{0}', space=sflag, size = 0x4, scoped, tag = 'scoped memory for actor_forward.1']
    #allocation9 [shape = 'u8[8192]{0}', space=vmem, size = 0x2000, scoped, tag = 'input window, operand 4, single buffered']
    %10 = vsyncpa [#allocation3], 0
    %11 = vsyncpa [#allocation5], 0
    %12 = vsyncpa [#allocation8], 0
    // Predicated region
    $region2: #{actor_forward.1} parent=1 // pred_check
      _
    $region3: #{actor_forward.1} parent=1 // pred_check_branch
      %14 = sbr.rel (0) target = $region5
    $region4: #{actor_forward.1} parent=1 // pred_region
      %16 = vsyncadd [#allocation3], 0
      %s18 = sshll.u32 %s0, 4
      %s19 = int_to_ptr.hbm [resolvable:$true] %s18
      %s20 = sshll.u32 [#allocation2], 4
      %s21 = int_to_ptr.vmem [resolvable:$true] %s20
      %23 = dma.hbm_to_vmem [thread:$0]  %s19, 32, %s21, [#allocation3]
    $region5: #{actor_forward.1} parent=1 // pred_fallthru
      _
    // Predicated region
    $region6: #{actor_forward.1} parent=1 // pred_check
      _
    $region7: #{actor_forward.1} parent=1 // pred_check_branch
      %25 = sbr.rel (0) target = $region9
    $region8: #{actor_forward.1} parent=1 // pred_region
      %27 = vsyncadd [#allocation5], 0
      %s29 = sshll.u32 %s1, 4
      %s30 = int_to_ptr.hbm [resolvable:$true] %s29
      %s31 = sshll.u32 [#allocation4], 4
      %s32 = int_to_ptr.vmem [resolvable:$true] %s31
      %34 = dma.hbm_to_vmem [thread:$0]  %s30, 64, %s32, [#allocation5]
    $region9: #{actor_forward.1} parent=1 // pred_fallthru
      _
    // Predicated region
    $region10: #{actor_forward.1} parent=1 // pred_check
      _
    $region11: #{actor_forward.1} parent=1 // pred_check_branch
      %36 = sbr.rel (0) target = $region13
    $region12: #{actor_forward.1} parent=1 // pred_region
      %38 = vsyncadd [#allocation5], 0
      %s39 = sshll.u32 %s2, 4
      %s40 = int_to_ptr.hbm [resolvable:$true] %s39
      %s41 = sshll.u32 [#allocation6], 4
      %s42 = int_to_ptr.vmem [resolvable:$true] %s41
      %47 = dma.hbm_to_vmem [thread:$0]  %s40, 1024, %s42, [#allocation5], 64, 64, 4
    $region13: #{actor_forward.1} parent=1 // pred_fallthru
      _
    // Predicated region
    $region14: #{actor_forward.1} parent=1 // pred_check
      _
    $region15: #{actor_forward.1} parent=1 // pred_check_branch
      %49 = sbr.rel (0) target = $region17
    $region16: #{actor_forward.1} parent=1 // pred_region
      %51 = vsyncadd [#allocation8], 0
      %s52 = sshll.u32 %s3, 4
      %s53 = int_to_ptr.hbm [resolvable:$true] %s52
      %s54 = sshll.u32 [#allocation7], 4
      %s55 = int_to_ptr.vmem [resolvable:$true] %s54
      %60 = dma.hbm_to_vmem [thread:$0]  %s53, 1024, %s55, [#allocation8], 64, 64, 4
    $region17: #{actor_forward.1} parent=1 // pred_fallthru
      _
    // Predicated region
    $region18: #{actor_forward.1} parent=1 // pred_check
      _
    $region19: #{actor_forward.1} parent=1 // pred_check_branch
      %62 = sbr.rel (0) target = $region21
    $region20: #{actor_forward.1} parent=1 // pred_region
      %64 = vsyncadd [#allocation8], 0
      %s65 = sshll.u32 %s4, 4
      %s66 = int_to_ptr.hbm [resolvable:$true] %s65
      %s67 = sshll.u32 [#allocation9], 4
      %s68 = int_to_ptr.vmem [resolvable:$true] %s67
      %73 = dma.hbm_to_vmem [thread:$0]  %s66, 256, %s68, [#allocation8], 128, 128, 8
    $region21: #{actor_forward.1} parent=1 // pred_fallthru
      _
    // Predicated region
    $region22: #{actor_forward.1} parent=1 // pred_check
      _
    $region23: #{actor_forward.1} parent=1 // pred_check_branch
      %75 = sbr.rel (0) target = $region25
    $region24: #{actor_forward.1} parent=1 // pred_region
      %77 = dma.done [#allocation3], 32
    $region25: #{actor_forward.1} parent=1 // pred_fallthru
      _
    // Predicated region
    $region26: #{actor_forward.1} parent=1 // pred_check
      _
    $region27: #{actor_forward.1} parent=1 // pred_check_branch
      %79 = sbr.rel (0) target = $region29
    $region28: #{actor_forward.1} parent=1 // pred_region
      %81 = dma.done [#allocation5], 64
    $region29: #{actor_forward.1} parent=1 // pred_fallthru
      _
    // Predicated region
    $region30: #{actor_forward.1} parent=1 // pred_check
      _
    $region31: #{actor_forward.1} parent=1 // pred_check_branch
      %83 = sbr.rel (0) target = $region33
    $region32: #{actor_forward.1} parent=1 // pred_region
      %85 = dma.done [#allocation5], 1024
    $region33: #{actor_forward.1} parent=1 // pred_fallthru
      _
    // Predicated region
    $region34: #{actor_forward.1} parent=1 // pred_check
      _
    $region35: #{actor_forward.1} parent=1 // pred_check_branch
      %87 = sbr.rel (0) target = $region37
    $region36: #{actor_forward.1} parent=1 // pred_region
      %89 = dma.done [#allocation8], 1024
    $region37: #{actor_forward.1} parent=1 // pred_fallthru
      _
    // Predicated region
    $region38: #{actor_forward.1} parent=1 // pred_check
      _
    $region39: #{actor_forward.1} parent=1 // pred_check_branch
      %91 = sbr.rel (0) target = $region41
    $region40: #{actor_forward.1} parent=1 // pred_region
      %93 = dma.done [#allocation8], 256
    $region41: #{actor_forward.1} parent=1 // pred_fallthru
      _
    %v95 = vld [vmem:[#allocation2] sm:$0x3]
    %v96 = vpack.c.bf16 %v95, %v95
    %v97 = vld [vmem:[#allocation9] sm:$0x1]
    %v98 = vld [vmem:[#allocation9 + $0x1] sm:$0x1]
    %v99 = vld [vmem:[#allocation9 + $0x2] sm:$0x1]
    %v100 = vld [vmem:[#allocation9 + $0x3] sm:$0x1]
    %v101 = vld [vmem:[#allocation9 + $0x4] sm:$0x1]
    %v102 = vld [vmem:[#allocation9 + $0x5] sm:$0x1]
    %v103 = vld [vmem:[#allocation9 + $0x6] sm:$0x1]
    %v104 = vld [vmem:[#allocation9 + $0x7] sm:$0x1]
    %v105 = vld [vmem:[#allocation9 + $0x8] sm:$0x1]
    %v106 = vld [vmem:[#allocation4] sm:$0xf]
    %v107 = vperm.slane %v97, 0
    %vm108 = vcmask 64512
    %v110 = vsel %vm108, %v96, 0
    %vm112 = vcmask 1043456
    %v114 = vsel %vm112, %v106, 0
    %116 = vmatpush.bf16.msra.mxu0 0
    %117 = vmatpush.bf16.msra.mxu0 0
    %118 = vmatpush.bf16.msra.mxu0 0
    %119 = vmatpush.bf16.msra.mxu0 0
    %120 = vmatpush.bf16.msra.mxu0 0
    %121 = vmatpush.bf16.msra.mxu0 0
    %122 = vmatpush.bf16.msra.mxu0 0
    %123 = vmatpush.bf16.msra.mxu0 %v114
    %124 = vmatmul.bf16.gmra.mxu0 %v110
    %v125 = vpop.f32.mrf.mxu0
    %v126 = vadd.f32 %v107, %v125
    %v127 = vpop.f32.mrf.mxu0
    %128 = vdwg.mxu0
    %vm129 = vcmask 1041408
    %v130 = vsel %vm129, %v126, 0.0
    %131 = vadd.xlane.f32.xlu0 %v130
    %v132 = vpop.xlane.xlu0 %131
    %v133 = vmul.f32 %v132, 0.03125
    %v134 = vsub.f32 %v126, %v133
    %v135 = vperm.slane %v100, 0
    %v136 = vmul.f32 %v134, %v135
    %v137 = vmul.f32 %v136, %v136
    %v138 = vsel %vm129, %v137, 0.0
    %139 = vadd.xlane.f32.xlu0 %v138
    %v140 = vpop.xlane.xlu0 %139
    %v141 = vmul.f32 %v140, 0.03125
    %v142 = vadd.f32 %v141, 1e-05
    %v143 = vrsqrt.pop %v142
    %v144 = vmul.f32 %v143, %v142
    %v145 = vmul.f32 %v144, %v143
    %v146 = vmul.f32 0.5, %v145
    %v147 = vsub.f32 1.5, %v146
    %v148 = vmul.f32 %v143, %v147
    %vm149 = vweird.f32 %v142
    %vm150 = vweird.f32 %v143
    %vm151 = vmor %vm149, %vm150
    %v152 = vsel %vm151, %v143, %v148
    %v153 = vmul.f32 %v134, %v152
    %v154 = vperm.slane %v98, 0
    %v155 = vmul.f32 %v153, %v154
    %v156 = vperm.slane %v99, 0
    %v157 = vadd.f32 %v155, %v156
    %v158 = vmax.f32 %v157, 0.0
    %v159 = vpack.c.bf16 %v158, %v158
    %v160 = vld [vmem:[#allocation6] sm:$0xf]
    %v161 = vld [vmem:[#allocation6 + $0x4] sm:$0xf]
    %v162 = vld [vmem:[#allocation6 + $0x8] sm:$0xf]
    %v163 = vld [vmem:[#allocation6 + $0xc] sm:$0xf]
    %v164 = vld [vmem:[#allocation6 + $0x10] sm:$0xf]
    %v165 = vld [vmem:[#allocation6 + $0x14] sm:$0xf]
    %v166 = vld [vmem:[#allocation6 + $0x18] sm:$0xf]
    %v167 = vld [vmem:[#allocation6 + $0x1c] sm:$0xf]
    %v168 = vld [vmem:[#allocation6 + $0x20] sm:$0xf]
    %v169 = vld [vmem:[#allocation6 + $0x24] sm:$0xf]
    %v170 = vld [vmem:[#allocation6 + $0x28] sm:$0xf]
    %v171 = vld [vmem:[#allocation6 + $0x2c] sm:$0xf]
    %v172 = vld [vmem:[#allocation6 + $0x30] sm:$0xf]
    %v173 = vld [vmem:[#allocation6 + $0x34] sm:$0xf]
    %v174 = vld [vmem:[#allocation6 + $0x38] sm:$0xf]
    %v175 = vld [vmem:[#allocation6 + $0x3c] sm:$0xf]
    %v176 = vperm.slane %v101, 0
    %v193 = vunpack.c.l.b16 %v160
    %v194 = vunpack.c.l.b16 %v161
    %v195 = vunpack.c.l.b16 %v162
    %v196 = vunpack.c.l.b16 %v163
    %v197 = vunpack.c.l.b16 %v164
    %v198 = vunpack.c.l.b16 %v165
    %v199 = vunpack.c.l.b16 %v166
    %v200 = vunpack.c.l.b16 %v167
    %v201 = vunpack.c.l.b16 %v168
    %v202 = vunpack.c.l.b16 %v169
    %v203 = vunpack.c.l.b16 %v170
    %v204 = vunpack.c.l.b16 %v171
    %v205 = vunpack.c.l.b16 %v172
    %v206 = vunpack.c.l.b16 %v173
    %v207 = vunpack.c.l.b16 %v174
    %v208 = vunpack.c.l.b16 %v175
    %v209 = vpack.c.b16 %v194, %v193
    %v210 = vpack.c.b16 %v196, %v195
    %v211 = vpack.c.b16 %v198, %v197
    %v212 = vpack.c.b16 %v200, %v199
    %v213 = vpack.c.b16 %v202, %v201
    %v214 = vpack.c.b16 %v204, %v203
    %v215 = vpack.c.b16 %v206, %v205
    %v216 = vpack.c.b16 %v208, %v207
    %225 = vmatpush.bf16.msra.mxu0 %v216
    %226 = vmatpush.bf16.msra.mxu0 %v215
    %227 = vmatpush.bf16.msra.mxu0 %v214
    %228 = vmatpush.bf16.msra.mxu0 %v213
    %229 = vmatpush.bf16.msra.mxu0 %v212
    %230 = vmatpush.bf16.msra.mxu0 %v211
    %231 = vmatpush.bf16.msra.mxu0 %v210
    %232 = vmatpush.bf16.msra.mxu0 %v209
    %233 = vmatmul.bf16.gmra.mxu0 %v159
    %v234 = vpop.f32.mrf.mxu0
    %v235 = vadd.f32 %v176, %v234
    %v236 = vpop.f32.mrf.mxu0
    %237 = vdwg.mxu0
    %v238 = vsel %vm129, %v235, 0.0
    %239 = vadd.xlane.f32.xlu0 %v238
    %v240 = vpop.xlane.xlu0 %239
    %v241 = vmul.f32 %v240, 0.03125
    %v242 = vsub.f32 %v235, %v241
    %v243 = vperm.slane %v104, 0
    %v244 = vmul.f32 %v242, %v243
    %v245 = vmul.f32 %v244, %v244
    %v246 = vsel %vm129, %v245, 0.0
    %247 = vadd.xlane.f32.xlu0 %v246
    %v248 = vpop.xlane.xlu0 %247
    %v249 = vmul.f32 %v248, 0.03125
    %v250 = vadd.f32 %v249, 1e-05
    %v251 = vrsqrt.pop %v250
    %v252 = vmul.f32 %v251, %v250
    %v253 = vmul.f32 %v252, %v251
    %v254 = vmul.f32 0.5, %v253
    %v255 = vsub.f32 1.5, %v254
    %v256 = vmul.f32 %v251, %v255
    %vm257 = vweird.f32 %v250
    %vm258 = vweird.f32 %v251
    %vm259 = vmor %vm257, %vm258
    %v260 = vsel %vm259, %v251, %v256
    %v261 = vmul.f32 %v242, %v260
    %v262 = vperm.slane %v102, 0
    %v263 = vmul.f32 %v261, %v262
    %v264 = vperm.slane %v103, 0
    %v265 = vadd.f32 %v263, %v264
    %v266 = vmax.f32 %v265, 0.0
    %v267 = vpack.c.bf16 %v266, %v266
    %v268 = vld [vmem:[#allocation7] sm:$0xf]
    %v269 = vld [vmem:[#allocation7 + $0x4] sm:$0xf]
    %v270 = vld [vmem:[#allocation7 + $0x8] sm:$0xf]
    %v271 = vld [vmem:[#allocation7 + $0xc] sm:$0xf]
    %v272 = vld [vmem:[#allocation7 + $0x10] sm:$0xf]
    %v273 = vld [vmem:[#allocation7 + $0x14] sm:$0xf]
    %v274 = vld [vmem:[#allocation7 + $0x18] sm:$0xf]
    %v275 = vld [vmem:[#allocation7 + $0x1c] sm:$0xf]
    %v276 = vld [vmem:[#allocation7 + $0x20] sm:$0xf]
    %v277 = vld [vmem:[#allocation7 + $0x24] sm:$0xf]
    %v278 = vld [vmem:[#allocation7 + $0x28] sm:$0xf]
    %v279 = vld [vmem:[#allocation7 + $0x2c] sm:$0xf]
    %v280 = vld [vmem:[#allocation7 + $0x30] sm:$0xf]
    %v281 = vld [vmem:[#allocation7 + $0x34] sm:$0xf]
    %v282 = vld [vmem:[#allocation7 + $0x38] sm:$0xf]
    %v283 = vld [vmem:[#allocation7 + $0x3c] sm:$0xf]
    %v284 = vperm.slane %v105, 0
    %v301 = vunpack.c.l.b16 %v268
    %v302 = vunpack.c.l.b16 %v269
    %v303 = vunpack.c.l.b16 %v270
    %v304 = vunpack.c.l.b16 %v271
    %v305 = vunpack.c.l.b16 %v272
    %v306 = vunpack.c.l.b16 %v273
    %v307 = vunpack.c.l.b16 %v274
    %v308 = vunpack.c.l.b16 %v275
    %v309 = vunpack.c.l.b16 %v276
    %v310 = vunpack.c.l.b16 %v277
    %v311 = vunpack.c.l.b16 %v278
    %v312 = vunpack.c.l.b16 %v279
    %v313 = vunpack.c.l.b16 %v280
    %v314 = vunpack.c.l.b16 %v281
    %v315 = vunpack.c.l.b16 %v282
    %v316 = vunpack.c.l.b16 %v283
    %v317 = vpack.c.b16 %v302, %v301
    %v318 = vpack.c.b16 %v304, %v303
    %v319 = vpack.c.b16 %v306, %v305
    %v320 = vpack.c.b16 %v308, %v307
    %v321 = vpack.c.b16 %v310, %v309
    %v322 = vpack.c.b16 %v312, %v311
    %v323 = vpack.c.b16 %v314, %v313
    %v324 = vpack.c.b16 %v316, %v315
    %333 = vmatpush.bf16.msra.mxu0 %v324
    %334 = vmatpush.bf16.msra.mxu0 %v323
    %335 = vmatpush.bf16.msra.mxu0 %v322
    %336 = vmatpush.bf16.msra.mxu0 %v321
    %337 = vmatpush.bf16.msra.mxu0 %v320
    %338 = vmatpush.bf16.msra.mxu0 %v319
    %339 = vmatpush.bf16.msra.mxu0 %v318
    %340 = vmatpush.bf16.msra.mxu0 %v317
    %341 = vmatmul.bf16.gmra.mxu0 %v267
    %v342 = vpop.f32.mrf.mxu0
    %v343 = vadd.f32 %v284, %v342
    %v344 = vpop.f32.mrf.mxu0
    %345 = vdwg.mxu0
    %v346 = vtanh.pop %v343
    %v347 = vpack.c.bf16 %v346, %v346
    %348 = vst [vmem:[%s5] sm:$0x1] %v347
    // Predicated region
    $region42: #{actor_forward.1} parent=1 // pred_check
      _
    $region43: #{actor_forward.1} parent=1 // pred_check_branch
      %350 = sbr.rel (0) target = $region45
    $region44: #{actor_forward.1} parent=1 // pred_region
      _
    $region45: #{actor_forward.1} parent=1 // pred_fallthru
      _
    // Predicated region
    $region46: #{actor_forward.1} parent=1 // pred_check
      _
    $region47: #{actor_forward.1} parent=1 // pred_check_branch
      %352 = sbr.rel (0) target = $region49
    $region48: #{actor_forward.1} parent=1 // pred_region
      _
    $region49: #{actor_forward.1} parent=1 // pred_fallthru
      _
    %353 = vsyncpa [#allocation3], 1
    %354 = vsyncpa [#allocation5], 1
    %355 = vsyncpa [#allocation8], 1

</llo_original>
